<compile_context>
chip_gen: v6e
topology: v6e:2x2x1
jax: 0.10.0
libtpu: 0.0.40
codegen_flags: <defaults>
</compile_context>

<pallas_src>
import functools

import jax
import jax.numpy as jnp
from jax import lax
from jax.experimental import pallas as pl
from jax.experimental.pallas import tpu as pltpu


def _round_up(x: int, m: int) -> int:
    return (x + m - 1) // m * m


def _fc_lrelu_stats_kernel(x_ref, w_ref, b_ref, h_ref, stats_ref, acc_ref,
                           *, negative_slope: float):
    """h = leaky_relu(x @ W^T + b) plus per-channel partial sum / sum-of-squares.

    x_ref: (TM, TK) bf16   w_ref: (TN, TK) bf16   b_ref: (1, TN) f32
    h_ref: (TM, TN) bf16   stats_ref: (8, TN) f32 (row 0 = sum, row 1 = sumsq)
    acc_ref: (TM, TN) f32 scratch accumulator (resident across the K axis).
    """
    k = pl.program_id(2)            # top-level only (interpret-mode safe)
    num_k = pl.num_programs(2)

    @pl.when(k == 0)
    def _():
        acc_ref[...] = jnp.zeros_like(acc_ref)

    # Contract K of both operands: RHS block is W itself (TN, TK), no transpose
    # materialized — the MXU handles the transposed RHS natively.
    acc_ref[...] += lax.dot_general(
        x_ref[...], w_ref[...],
        dimension_numbers=(((1,), (1,)), ((), ())),
        preferred_element_type=jnp.float32)

    @pl.when(k == num_k - 1)
    def _():
        h = acc_ref[...] + b_ref[...]                     # (TM, TN) f32
        h = jnp.where(h >= 0, h, negative_slope * h)      # LeakyReLU
        h_ref[...] = h.astype(h_ref.dtype)                # bf16 intermediate
        # Single-pass per-channel partial statistics, written lane-dense into
        # sublanes 0 (sum) and 1 (sum of squares); no padded-row masking here —
        # the wrapper applies a closed-form correction instead.
        stats_ref[0:1, :] = jnp.sum(h, axis=0, keepdims=True)
        stats_ref[1:2, :] = jnp.sum(h * h, axis=0, keepdims=True)


def _bn_apply_kernel(h_ref, scale_ref, shift_ref, out_ref):
    h = h_ref[...].astype(jnp.float32)
    out_ref[...] = (h * scale_ref[...] + shift_ref[...]).astype(out_ref.dtype)


def dense_relu_forward(x, w, b, gamma, beta, *,
                       eps: float = 1e-5, negative_slope: float = 0.01,
                       tm: int = 512, tn: int = 512, tk: int = 512):
    """Pallas equivalent of DenseReLU.forward (training-mode batch statistics).

    x: (..., in_dim); w: (out_dim, in_dim); b, gamma, beta: (out_dim,).
    """
    orig_shape = x.shape
    x2 = x.reshape(-1, orig_shape[-1])
    M, K = x2.shape
    N = w.shape[0]

    # Tile sizes: clamp to (8, 128)-aligned full extents for small shapes.
    TM = min(tm, _round_up(M, 8))
    TK = min(tk, _round_up(K, 128))
    TN = min(tn, _round_up(N, 128))
    Mp, Kp, Np = _round_up(M, TM), _round_up(K, TK), _round_up(N, TN)
    GM, GK, GN = Mp // TM, Kp // TK, Np // TN

    f32, bf16 = jnp.float32, jnp.bfloat16

    # bf16 MXU operands; pad only when the shape is actually ragged.
    xb = x2.astype(bf16)
    if (Mp, Kp) != (M, K):
        xb = jnp.zeros((Mp, Kp), bf16).at[:M, :K].set(xb)
    wb = w.astype(bf16)                                    # (N, K), no transpose
    if (Np, Kp) != (N, K):
        wb = jnp.zeros((Np, Kp), bf16).at[:N, :K].set(wb)
    bp = b.astype(f32).reshape(1, N)
    gp = gamma.astype(f32)
    btp = beta.astype(f32)
    if Np != N:
        bp = jnp.zeros((1, Np), f32).at[:, :N].set(bp)
        gp = jnp.zeros((Np,), f32).at[:N].set(gp)
        btp = jnp.zeros((Np,), f32).at[:N].set(btp)

    kernel1 = functools.partial(_fc_lrelu_stats_kernel,
                                negative_slope=negative_slope)
    h, stats = pl.pallas_call(
        kernel1,
        out_shape=(jax.ShapeDtypeStruct((Mp, Np), bf16),
                   jax.ShapeDtypeStruct((8 * GM, Np), f32)),
        grid_spec=pltpu.PrefetchScalarGridSpec(
            num_scalar_prefetch=0,
            grid=(GM, GN, GK),
            in_specs=[pl.BlockSpec((TM, TK), lambda i, j, k: (i, k)),
                      pl.BlockSpec((TN, TK), lambda i, j, k: (j, k)),
                      pl.BlockSpec((1, TN), lambda i, j, k: (0, j))],
            out_specs=[pl.BlockSpec((TM, TN), lambda i, j, k: (i, j)),
                       pl.BlockSpec((8, TN), lambda i, j, k: (i, j))],
            scratch_shapes=[pltpu.VMEM((TM, TN), f32)]),
        compiler_params=pltpu.CompilerParams(
            dimension_semantics=("parallel", "parallel", "arbitrary")),
    )(xb, wb, bp)

    # Tiny O(N) reductions / BN parameters in plain JAX.  Padded M rows of h
    # are exactly leaky_relu(b) per channel (their x rows are zero), so correct
    # the sums in closed form instead of masking inside the kernel epilogue.
    stats = stats.reshape(GM, 8, Np)
    total = jnp.sum(stats[:, 0, :], axis=0)
    total_sq = jnp.sum(stats[:, 1, :], axis=0)
    if Mp != M:
        pad_rows = float(Mp - M)
        h_pad = jnp.where(bp[0] >= 0, bp[0], negative_slope * bp[0])
        total = total - pad_rows * h_pad
        total_sq = total_sq - pad_rows * h_pad * h_pad
    mean = total / M
    var = jnp.maximum(total_sq / M - mean * mean, 0.0)   # biased var (BN training)
    inv_std = lax.rsqrt(var + eps)
    scale = (gp * inv_std).reshape(1, Np)
    shift = (btp - mean * gp * inv_std).reshape(1, Np)
    # TODO(synk): BatchNorm1d running_mean/running_var buffer updates (training
    # side effect) are not materialized; the returned activations don't need them.

    out_p = pl.pallas_call(
        _bn_apply_kernel,
        out_shape=jax.ShapeDtypeStruct((Mp, Np), x.dtype),
        grid_spec=pltpu.PrefetchScalarGridSpec(
            num_scalar_prefetch=0,
            grid=(GM, GN),
            in_specs=[pl.BlockSpec((TM, TN), lambda i, j: (i, j)),
                      pl.BlockSpec((1, TN), lambda i, j: (0, j)),
                      pl.BlockSpec((1, TN), lambda i, j: (0, j))],
            out_specs=pl.BlockSpec((TM, TN), lambda i, j: (i, j))),
        compiler_params=pltpu.CompilerParams(
            dimension_semantics=("parallel", "parallel")),
    )(h, scale, shift)

    out = out_p[:M, :N]
    return out.reshape(orig_shape[:-1] + (N,))


def _reference(x, w, b, gamma, beta, eps=1e-5, negative_slope=0.01):
    """Pure-JAX mirror of the PyTorch module's forward (training-mode BN)."""
    h = x @ w.T + b
    h = jnp.where(h >= 0, h, negative_slope * h)
    h2 = h.reshape(-1, h.shape[-1])
    mean = jnp.mean(h2, axis=0)
    var = jnp.mean((h2 - mean) ** 2, axis=0)     # biased variance
    out2 = (h2 - mean) * lax.rsqrt(var + eps) * gamma + beta
    return out2.reshape(h.shape)


if __name__ == "__main__":
    key = jax.random.PRNGKey(0)
    B, T, in_dim, out_dim = 2, 8, 32, 48
    k1, k2, k3, k4, k5 = jax.random.split(key, 5)

    x = jax.random.normal(k1, (B, T, in_dim), dtype=jnp.float32)
    bound = 1.0 / (in_dim ** 0.5)
    w = jax.random.uniform(k2, (out_dim, in_dim), jnp.float32, -bound, bound)
    b = jax.random.uniform(k3, (out_dim,), jnp.float32, -bound, bound)
    gamma = 1.0 + 0.1 * jax.random.normal(k4, (out_dim,), jnp.float32)
    beta = 0.1 * jax.random.normal(k5, (out_dim,), jnp.float32)

    out = dense_relu_forward(x, w, b, gamma, beta)
    jax.block_until_ready(out)

    ref = _reference(x, w, b, gamma, beta)
    assert out.shape == ref.shape, (out.shape, ref.shape)
    # bf16 MXU operands + bf16 intermediate h => modest tolerance vs f32 ref.
    max_err = float(jnp.max(jnp.abs(out - ref)))
    assert jnp.allclose(out, ref, atol=3e-2, rtol=3e-2), max_err

    print("KERNEL_OK")
</pallas_src>

<mosaic_0001>
module attributes {stable_mosaic.version = 11 : i64} {
  func.func @_fc_lrelu_stats_kernel(%arg0: i32, %arg1: i32, %arg2: i32, %arg3: memref<16x128xbf16, #tpu.memory_space<vmem>>, %arg4: memref<128x128xbf16, #tpu.memory_space<vmem>>, %arg5: memref<1x128xf32, #tpu.memory_space<vmem>>, %arg6: memref<16x128xbf16, #tpu.memory_space<vmem>>, %arg7: memref<8x128xf32, #tpu.memory_space<vmem>>, %arg8: memref<16x128xf32, #tpu.memory_space<vmem>>) attributes {dimension_semantics = [#tpu.dimension_semantics<parallel>, #tpu.dimension_semantics<parallel>, #tpu.dimension_semantics<arbitrary>], iteration_bounds = array<i64: 1, 1, 1>, scalar_prefetch = 0 : i64, scratch_operands = 1 : i64, tpu.core_type = #tpu.core_type<tc>, window_params = [{transform_indices = @transform_0, window_bounds = array<i64: 16, 128>}, {transform_indices = @transform_1, window_bounds = array<i64: 128, 128>}, {transform_indices = @transform_2, window_bounds = array<i64: 1, 128>}, {transform_indices = @transform_3, window_bounds = array<i64: 16, 128>}, {transform_indices = @transform_4, window_bounds = array<i64: 8, 128>}]} {
    %c0_i32 = arith.constant 0 : i32
    %0 = arith.cmpi eq, %arg2, %c0_i32 : i32
    %1 = arith.extui %0 : i1 to i32
    %c0_i32_0 = arith.constant 0 : i32
    %2 = arith.cmpi ne, %1, %c0_i32_0 : i32
    scf.if %2 {
      %cst_10 = arith.constant 0.000000e+00 : f32
      %12 = vector.broadcast %cst_10 : f32 to vector<16x128xf32>
      %c0_11 = arith.constant 0 : index
      %c0_12 = arith.constant 0 : index
      %13 = vector.load %arg8[%c0_11, %c0_12] : memref<16x128xf32, #tpu.memory_space<vmem>>, vector<16x128xf32>
      tpu.vector_store %arg8[%c0_11, %c0_12], %12 {strides = array<i32>} : memref<16x128xf32, #tpu.memory_space<vmem>>, vector<16x128xf32>,
    } else {
    }
    %c0 = arith.constant 0 : index
    %c0_1 = arith.constant 0 : index
    %3 = vector.load %arg8[%c0, %c0_1] : memref<16x128xf32, #tpu.memory_space<vmem>>, vector<16x128xf32>
    %c0_2 = arith.constant 0 : index
    %c0_3 = arith.constant 0 : index
    %4 = vector.load %arg3[%c0_2, %c0_3] : memref<16x128xbf16, #tpu.memory_space<vmem>>, vector<16x128xbf16>
    %c0_4 = arith.constant 0 : index
    %c0_5 = arith.constant 0 : index
    %5 = vector.load %arg4[%c0_4, %c0_5] : memref<128x128xbf16, #tpu.memory_space<vmem>>, vector<128x128xbf16>
    %cst = arith.constant dense<0.000000e+00> : vector<16x128xf32>
    %6 = tpu.matmul %4, %5, %cst {dimension_numbers = #tpu.dot_dimension_numbers<[1], [1], [0], [0], [0, 0, 1, 0], [], []>} : vector<16x128xbf16>, vector<128x128xbf16>, vector<16x128xf32> -> vector<16x128xf32>
    %7 = arith.addf %3, %6 : vector<16x128xf32>
    %c0_6 = arith.constant 0 : index
    %c0_7 = arith.constant 0 : index
    %8 = vector.load %arg8[%c0_6, %c0_7] : memref<16x128xf32, #tpu.memory_space<vmem>>, vector<16x128xf32>
    tpu.vector_store %arg8[%c0_6, %c0_7], %7 {strides = array<i32>} : memref<16x128xf32, #tpu.memory_space<vmem>>, vector<16x128xf32>,
    %c0_i32_8 = arith.constant 0 : i32
    %9 = arith.cmpi eq, %arg2, %c0_i32_8 : i32
    %10 = arith.extui %9 : i1 to i32
    %c0_i32_9 = arith.constant 0 : i32
    %11 = arith.cmpi ne, %10, %c0_i32_9 : i32
    scf.if %11 {
      %c0_10 = arith.constant 0 : index
      %c0_11 = arith.constant 0 : index
      %12 = vector.load %arg8[%c0_10, %c0_11] : memref<16x128xf32, #tpu.memory_space<vmem>>, vector<16x128xf32>
      %c0_12 = arith.constant 0 : index
      %c0_13 = arith.constant 0 : index
      %13 = vector.load %arg5[%c0_12, %c0_13] : memref<1x128xf32, #tpu.memory_space<vmem>>, vector<1x128xf32>
      %14 = vector.broadcast %13 : vector<1x128xf32> to vector<16x128xf32>
      %15 = arith.addf %12, %14 : vector<16x128xf32>
      %cst_14 = arith.constant 0.000000e+00 : f32
      %16 = vector.broadcast %cst_14 : f32 to vector<16x128xf32>
      %17 = arith.cmpf oge, %15, %16 : vector<16x128xf32>
      %cst_15 = arith.constant 0.00999999977 : f32
      %18 = vector.broadcast %cst_15 : f32 to vector<16x128xf32>
      %19 = arith.mulf %18, %15 : vector<16x128xf32>
      %20 = arith.select %17, %15, %19 : vector<16x128xi1>, vector<16x128xf32>
      %21 = arith.truncf %20 : vector<16x128xf32> to vector<16x128xbf16>
      %c0_16 = arith.constant 0 : index
      %c0_17 = arith.constant 0 : index
      %22 = vector.load %arg6[%c0_16, %c0_17] : memref<16x128xbf16, #tpu.memory_space<vmem>>, vector<16x128xbf16>
      tpu.vector_store %arg6[%c0_16, %c0_17], %21 {strides = array<i32>} : memref<16x128xbf16, #tpu.memory_space<vmem>>, vector<16x128xbf16>,
      %cst_18 = arith.constant dense<0.000000e+00> : vector<128xf32>
      %23 = vector.multi_reduction <add>, %20, %cst_18 [0] : vector<16x128xf32> to vector<128xf32>
      %24 = vector.shape_cast %23 : vector<128xf32> to vector<1x128xf32>
      %c0_19 = arith.constant 0 : index
      %c0_20 = arith.constant 0 : index
      %25 = vector.load %arg7[%c0_19, %c0_20] : memref<8x128xf32, #tpu.memory_space<vmem>>, vector<1x128xf32>
      tpu.vector_store %arg7[%c0_19, %c0_20], %24 {strides = array<i32>} : memref<8x128xf32, #tpu.memory_space<vmem>>, vector<1x128xf32>,
      %26 = arith.mulf %20, %20 : vector<16x128xf32>
      %cst_21 = arith.constant dense<0.000000e+00> : vector<128xf32>
      %27 = vector.multi_reduction <add>, %26, %cst_21 [0] : vector<16x128xf32> to vector<128xf32>
      %28 = vector.shape_cast %27 : vector<128xf32> to vector<1x128xf32>
      %c1 = arith.constant 1 : index
      %c0_22 = arith.constant 0 : index
      %29 = vector.load %arg7[%c1, %c0_22] : memref<8x128xf32, #tpu.memory_space<vmem>>, vector<1x128xf32>
      tpu.vector_store %arg7[%c1, %c0_22], %28 {strides = array<i32>} : memref<8x128xf32, #tpu.memory_space<vmem>>, vector<1x128xf32>,
    } else {
    }
    return
  }
  func.func @transform_0(%arg0: i32, %arg1: i32, %arg2: i32) -> (i32, i32) {
    %c0_i32 = arith.constant 0 : i32
    return %arg0, %arg2 : i32, i32
  }
  func.func @transform_1(%arg0: i32, %arg1: i32, %arg2: i32) -> (i32, i32) {
    %c0_i32 = arith.constant 0 : i32
    return %arg1, %arg2 : i32, i32
  }
  func.func @transform_2(%arg0: i32, %arg1: i32, %arg2: i32) -> (i32, i32) {
    %c0_i32 = arith.constant 0 : i32
    %c0_i32_0 = arith.constant 0 : i32
    return %c0_i32, %arg1 : i32, i32
  }
  func.func @transform_3(%arg0: i32, %arg1: i32, %arg2: i32) -> (i32, i32) {
    %c0_i32 = arith.constant 0 : i32
    return %arg0, %arg1 : i32, i32
  }
  func.func @transform_4(%arg0: i32, %arg1: i32, %arg2: i32) -> (i32, i32) {
    %c0_i32 = arith.constant 0 : i32
    return %arg0, %arg1 : i32, i32
  }
}

</mosaic_0001>

<llo_original>
// kernel: tpu_custom_call.1
$region0: #{tpu_custom_call.1}
  #allocation0 [shape = 'u32[]', space=smem, size = 0x4, offset = 0x4, fixed_abs, tag = 'smem constant byte address 0x4 - core index']
  #allocation1 [shape = 'u32[144,128]{1,0:T(1,128)}', space=vmem, size = 0x12000, scoped, tag = 'internal scratch']
  #allocation2 [shape = 'f32[16,128]{1,0:T(8,128)}', space=vmem, size = 0x2000, scoped, tag = 'scratch operand']
  %s0 = inlined_call_operand.hbm [shape: bf16[16,128], index: 0, kind: input, shape index: {}]
  %s1 = inlined_call_operand.hbm [shape: bf16[128,128], index: 1, kind: input, shape index: {}]
  %s2 = inlined_call_operand.vmem [shape: f32[1,128], index: 2, kind: input, shape index: {}]
  %s3 = inlined_call_operand.hbm [shape: bf16[16,128], index: 3, kind: output, shape index: {0}]
  %s4 = inlined_call_operand.hbm [shape: f32[8,128], index: 4, kind: output, shape index: {1}]
  %5 = xla_tuple %s3, %s4
  %s6 = sld [smem:[#allocation0]]
  $region46: #{tpu_custom_call.1} parent=0
    _
  %s8 = ssub.s32 1, %s6
  %s9 = scalar_select 0, %s8, %s6
  $region1: #{tpu_custom_call.1} parent=0
    #allocation3 [shape = 'u8[4096]{0}', space=vmem, size = 0x1000, scoped, tag = 'input window, operand 0, single buffered']
    #allocation4 [shape = 's32[1]{0}', space=sflag, size = 0x4, scoped, tag = 'scoped memory for tpu_custom_call.1']
    #allocation5 [shape = 's32[1]{0}', space=sflag, size = 0x4, scoped, tag = 'scoped memory for tpu_custom_call.1']
    #allocation6 [shape = 'u8[32768]{0}', space=vmem, size = 0x8000, scoped, tag = 'input window, operand 1, single buffered']
    #allocation7 [shape = 's32[1]{0}', space=sflag, size = 0x4, scoped, tag = 'scoped memory for tpu_custom_call.1']
    #allocation8 [shape = 'u8[4096]{0}', space=vmem, size = 0x1000, scoped, tag = 'output window, operand 0, single buffered']
    #allocation9 [shape = 'u8[4096]{0}', space=vmem, size = 0x1000, scoped, tag = 'output window, operand 1, single buffered']
    #allocation10 [shape = 's32[1]{0}', space=sflag, size = 0x4, scoped, tag = 'scoped memory for tpu_custom_call.1']
    %10 = vsyncpa [#allocation4], 0
    %11 = vsyncpa [#allocation7], 0
    %12 = vsyncpa [#allocation5], 0
    %13 = vsyncpa [#allocation10], 0
    // Predicated region
    $region2: #{tpu_custom_call.1} parent=1 // pred_check
      _
    $region3: #{tpu_custom_call.1} parent=1 // pred_check_branch
      %15 = sbr.rel (0) target = $region5
    $region4: #{tpu_custom_call.1} parent=1 // pred_region
      %s17 = ssub.s32 128, 128
      %18 = vsyncadd [#allocation4], %s17
      %s19 = sshll.u32 [#allocation3], 4
      %s20 = int_to_ptr.vmem [resolvable:$true] %s19
      %25 = dma.hbm_to_vmem [thread:$0]  %s0, 128, %s20, [#allocation4], 64, 64, 4
    $region5: #{tpu_custom_call.1} parent=1 // pred_fallthru
      _
    // Predicated region
    $region6: #{tpu_custom_call.1} parent=1 // pred_check
      _
    $region7: #{tpu_custom_call.1} parent=1 // pred_check_branch
      %27 = sbr.rel (0) target = $region9
    $region8: #{tpu_custom_call.1} parent=1 // pred_region
      %s29 = ssub.s32 1024, 1024
      %30 = vsyncadd [#allocation7], %s29
      %s31 = sshll.u32 [#allocation6], 4
      %s32 = int_to_ptr.vmem [resolvable:$true] %s31
      %37 = dma.hbm_to_vmem [thread:$0]  %s1, 1024, %s32, [#allocation7], 64, 64, 4
    $region9: #{tpu_custom_call.1} parent=1 // pred_fallthru
      _
    // Predicated region
    $region10: #{tpu_custom_call.1} parent=1 // pred_check
      _
    $region11: #{tpu_custom_call.1} parent=1 // pred_check_branch
      %39 = sbr.rel (0) target = $region13
    $region12: #{tpu_custom_call.1} parent=1 // pred_region
      _
    $region13: #{tpu_custom_call.1} parent=1 // pred_fallthru
      _
    // Predicated region
    $region14: #{tpu_custom_call.1} parent=1 // pred_check
      _
    $region15: #{tpu_custom_call.1} parent=1 // pred_check_branch
      %41 = sbr.rel (0) target = $region17
    $region16: #{tpu_custom_call.1} parent=1 // pred_region
      %42 = dma.done [#allocation4], 128
    $region17: #{tpu_custom_call.1} parent=1 // pred_fallthru
      _
    // Predicated region
    $region18: #{tpu_custom_call.1} parent=1 // pred_check
      _
    $region19: #{tpu_custom_call.1} parent=1 // pred_check_branch
      %44 = sbr.rel (0) target = $region21
    $region20: #{tpu_custom_call.1} parent=1 // pred_region
      %45 = dma.done [#allocation7], 1024
    $region21: #{tpu_custom_call.1} parent=1 // pred_fallthru
      _
    %p47 = scmp.eq.s32.totalorder 0, 0
    // Predicated region
    $region22: #{tpu_custom_call.1} parent=1 // pred_check
      %p48 = pneg %p47
    $region23: #{tpu_custom_call.1} parent=1 // pred_check_branch
      %50 = sbr.rel (%p48) target = $region25
    $region24: #{tpu_custom_call.1} parent=1 // pred_region
      %51 = vst [vmem:[#allocation2] sm:$0xff] 0.0
      %52 = vst [vmem:[#allocation2 + $0x8] sm:$0xff] 0.0
    $region25: #{tpu_custom_call.1} parent=1 // pred_fallthru
      _
    %v53 = vld [vmem:[#allocation2] sm:$0xff]
    %v54 = vld [vmem:[#allocation2 + $0x8] sm:$0xff]
    %v55 = vld [vmem:[#allocation3] sm:$0xf]
    %v56 = vld [vmem:[#allocation3 + $0x4] sm:$0xf]
    %v57 = vld [vmem:[#allocation6] sm:$0xf]
    %v58 = vld [vmem:[#allocation6 + $0x4] sm:$0xf]
    %v59 = vld [vmem:[#allocation6 + $0x8] sm:$0xf]
    %v60 = vld [vmem:[#allocation6 + $0xc] sm:$0xf]
    %v61 = vld [vmem:[#allocation6 + $0x10] sm:$0xf]
    %v62 = vld [vmem:[#allocation6 + $0x14] sm:$0xf]
    %v63 = vld [vmem:[#allocation6 + $0x18] sm:$0xf]
    %v64 = vld [vmem:[#allocation6 + $0x1c] sm:$0xf]
    %v65 = vld [vmem:[#allocation6 + $0x20] sm:$0xf]
    %v66 = vld [vmem:[#allocation6 + $0x24] sm:$0xf]
    %v67 = vld [vmem:[#allocation6 + $0x28] sm:$0xf]
    %v68 = vld [vmem:[#allocation6 + $0x2c] sm:$0xf]
    %v69 = vld [vmem:[#allocation6 + $0x30] sm:$0xf]
    %v70 = vld [vmem:[#allocation6 + $0x34] sm:$0xf]
    %v71 = vld [vmem:[#allocation6 + $0x38] sm:$0xf]
    %v72 = vld [vmem:[#allocation6 + $0x3c] sm:$0xf]
    %v75 = vunpack.c.l.b16 %v55
    %v76 = vunpack.c.l.b16 %v56
    %v77 = vpack.c.b16 %v76, %v75
    %v95 = vunpack.c.l.b16 %v57
    %v96 = vunpack.c.l.b16 %v58
    %v97 = vunpack.c.l.b16 %v59
    %v98 = vunpack.c.l.b16 %v60
    %v99 = vunpack.c.l.b16 %v61
    %v100 = vunpack.c.l.b16 %v62
    %v101 = vunpack.c.l.b16 %v63
    %v102 = vunpack.c.l.b16 %v64
    %v103 = vunpack.c.l.b16 %v65
    %v104 = vunpack.c.l.b16 %v66
    %v105 = vunpack.c.l.b16 %v67
    %v106 = vunpack.c.l.b16 %v68
    %v107 = vunpack.c.l.b16 %v69
    %v108 = vunpack.c.l.b16 %v70
    %v109 = vunpack.c.l.b16 %v71
    %v110 = vunpack.c.l.b16 %v72
    %v111 = vpack.c.b16 %v96, %v95
    %v112 = vpack.c.b16 %v98, %v97
    %v113 = vpack.c.b16 %v100, %v99
    %v114 = vpack.c.b16 %v102, %v101
    %v115 = vpack.c.b16 %v104, %v103
    %v116 = vpack.c.b16 %v106, %v105
    %v117 = vpack.c.b16 %v108, %v107
    %v118 = vpack.c.b16 %v110, %v109
    %127 = vmatprep.subr.bf16.mxu0 0
    %128 = vmatpush1.bf16.xpose.msra.mxu0 %v118
    %129 = vmatprep.subr.bf16.mxu0 0
    %130 = vmatpush1.bf16.xpose.msra.mxu0 %v117
    %131 = vmatprep.subr.bf16.mxu0 0
    %132 = vmatpush1.bf16.xpose.msra.mxu0 %v116
    %133 = vmatprep.subr.bf16.mxu0 0
    %134 = vmatpush1.bf16.xpose.msra.mxu0 %v115
    %135 = vmatprep.subr.bf16.mxu0 0
    %136 = vmatpush1.bf16.xpose.msra.mxu0 %v114
    %137 = vmatprep.subr.bf16.mxu0 0
    %138 = vmatpush1.bf16.xpose.msra.mxu0 %v113
    %139 = vmatprep.subr.bf16.mxu0 0
    %140 = vmatpush1.bf16.xpose.msra.mxu0 %v112
    %141 = vmatprep.subr.bf16.mxu0 0
    %142 = vmatpush1.bf16.xpose.msra.mxu0 %v111
    %143 = vmatprep.subr.bf16.mxu0 0
    %144 = vmatpush2.bf16.xpose.msra.mxu0 0
    %145 = vmatprep.subr.bf16.mxu0 0
    %146 = vmatpush2.bf16.xpose.msra.mxu0 0
    %147 = vmatprep.subr.bf16.mxu0 0
    %148 = vmatpush2.bf16.xpose.msra.mxu0 0
    %149 = vmatprep.subr.bf16.mxu0 0
    %150 = vmatpush2.bf16.xpose.msra.mxu0 0
    %151 = vmatprep.subr.bf16.mxu0 0
    %152 = vmatpush2.bf16.xpose.msra.mxu0 0
    %153 = vmatprep.subr.bf16.mxu0 0
    %154 = vmatpush2.bf16.xpose.msra.mxu0 0
    %155 = vmatprep.subr.bf16.mxu0 0
    %156 = vmatpush2.bf16.xpose.msra.mxu0 0
    %157 = vmatprep.subr.bf16.mxu0 0
    %158 = vmatpush2.bf16.xpose.msra.mxu0 0
    %159 = vmatprep.mubr.bf16.mxu0 0
    %160 = vmatmul.mubr.bf16.gmra.mxu0 %v77
    %v161 = vpop.f32.mrf.mxu0
    %v162 = vadd.f32 0.0, %v161
    %v163 = vpop.f32.mrf.mxu0
    %v164 = vpop.f32.mrf.mxu0
    %v165 = vadd.f32 0.0, %v164
    %v166 = vpop.f32.mrf.mxu0
    %167 = vdwg.mxu0
    %v168 = vadd.f32 %v53, %v162
    %v169 = vadd.f32 %v54, %v165
    %170 = vst [vmem:[#allocation2] sm:$0xff] %v168
    %171 = vst [vmem:[#allocation2 + $0x8] sm:$0xff] %v169
    // Predicated region
    $region26: #{tpu_custom_call.1} parent=1 // pred_check
      %p172 = pneg %p47
    $region27: #{tpu_custom_call.1} parent=1 // pred_check_branch
      %174 = sbr.rel (%p172) target = $region29
    $region28: #{tpu_custom_call.1} parent=1 // pred_region
      %v175 = vld [vmem:[#allocation2] sm:$0xff]
      %v176 = vld [vmem:[#allocation2 + $0x8] sm:$0xff]
      %v177 = vld [vmem:[%s2] sm:$0x1]
      %v179 = vlaneseq
      %v180 = vshrl.u32 %v179, 7
      %v181 = vsub.s32 0, %v180
      %v182 = vrot.slane %v177, %v181
      %v184 = vadd.f32 %v175, %v182
      %v185 = vadd.f32 %v176, %v182
      %vm186 = vcmp.ge.f32.partialorder %v184, 0.0
      %vm187 = vcmp.ge.f32.partialorder %v185, 0.0
      %v188 = vmul.f32 %v184, 0.01
      %v189 = vmul.f32 %v185, 0.01
      %v190 = vsel %vm186, %v184, %v188
      %v191 = vsel %vm187, %v185, %v189
      %v192 = vpack.c.bf16 %v191, %v190
      %v194 = vunpack.c.l.b16 %v192
      %v195 = vunpack.c.h.b16 %v192
      %v196 = vpack.c.b16 %v194, %v194
      %v197 = vpack.c.b16 %v195, %v195
      %200 = vst [vmem:[#allocation8] sm:$0xf] %v196
      %201 = vst [vmem:[#allocation8 + $0x4] sm:$0xf] %v197
      %v202 = vadd.f32 %v190, %v191
      %v203 = vrot.slane %v202, 4
      %v204 = vadd.f32 %v202, %v203
      %v205 = vrot.slane %v204, 2
      %v206 = vadd.f32 %v204, %v205
      %v207 = vrot.slane %v206, 1
      %v208 = vadd.f32 %v206, %v207
      %209 = vst [vmem:[#allocation9] sm:$0x1] %v208
      %v210 = vmul.f32 %v190, %v190
      %v211 = vmul.f32 %v191, %v191
      %v212 = vadd.f32 %v210, %v211
      %v213 = vrot.slane %v212, 4
      %v214 = vadd.f32 %v212, %v213
      %v215 = vrot.slane %v214, 2
      %v216 = vadd.f32 %v214, %v215
      %v217 = vrot.slane %v216, 1
      %v218 = vadd.f32 %v216, %v217
      %219 = vst [vmem:[#allocation9 + $0x1] sm:$0x1] %v218
    $region29: #{tpu_custom_call.1} parent=1 // pred_fallthru
      _
    // Predicated region
    $region30: #{tpu_custom_call.1} parent=1 // pred_check
      _
    $region31: #{tpu_custom_call.1} parent=1 // pred_check_branch
      %221 = sbr.rel (0) target = $region33
    $region32: #{tpu_custom_call.1} parent=1 // pred_region
      %s223 = ssub.s32 128, 128
      %224 = vsyncadd [#allocation5], %s223
      %s225 = sshll.u32 [#allocation8], 4
      %s226 = int_to_ptr.vmem [resolvable:$true] %s225
      %231 = dma.vmem_to_hbm [thread:$0]  %s226, 128, %s3, [#allocation5], 64, 64, 4
    $region33: #{tpu_custom_call.1} parent=1 // pred_fallthru
      _
    // Predicated region
    $region34: #{tpu_custom_call.1} parent=1 // pred_check
      _
    $region35: #{tpu_custom_call.1} parent=1 // pred_check_branch
      %233 = sbr.rel (0) target = $region37
    $region36: #{tpu_custom_call.1} parent=1 // pred_region
      %s235 = ssub.s32 128, 128
      %236 = vsyncadd [#allocation10], %s235
      %s238 = sshll.u32 [#allocation9], 4
      %s239 = int_to_ptr.vmem [resolvable:$true] %s238
      %241 = dma.vmem_to_hbm [thread:$0]  %s239, 128, %s4, [#allocation10]
    $region37: #{tpu_custom_call.1} parent=1 // pred_fallthru
      _
    // Predicated region
    $region38: #{tpu_custom_call.1} parent=1 // pred_check
      _
    $region39: #{tpu_custom_call.1} parent=1 // pred_check_branch
      %243 = sbr.rel (0) target = $region41
    $region40: #{tpu_custom_call.1} parent=1 // pred_region
      %244 = dma.done [#allocation5], 128
    $region41: #{tpu_custom_call.1} parent=1 // pred_fallthru
      _
    // Predicated region
    $region42: #{tpu_custom_call.1} parent=1 // pred_check
      _
    $region43: #{tpu_custom_call.1} parent=1 // pred_check_branch
      %246 = sbr.rel (0) target = $region45
    $region44: #{tpu_custom_call.1} parent=1 // pred_region
      %247 = dma.done [#allocation10], 128
    $region45: #{tpu_custom_call.1} parent=1 // pred_fallthru
      _
    %248 = vsyncpa [#allocation4], 1
    %249 = vsyncpa [#allocation7], 1
    %250 = vsyncpa [#allocation5], 1
    %251 = vsyncpa [#allocation10], 1

</llo_original>
